<compile_context>
chip_gen: v7x
topology: tpu7x:2x2x1
jax: 0.10.0
libtpu: 0.0.40
codegen_flags: <defaults>
</compile_context>

<pallas_src>
import functools

import jax
import jax.numpy as jnp
from jax.experimental import pallas as pl
from jax.experimental.pallas import tpu as pltpu


# ---------------------------------------------------------------------------
# Pallas kernel: fused residual + dropout(eval) + LayerNorm (SublayerConnection)
# ---------------------------------------------------------------------------
def _sublayer_connection_kernel(x_ref, y_ref, a_ref, b_ref, o_ref, *, eps, feat):
    # Residual connection; dropout == identity in eval mode.
    # TODO(synk): training-mode dropout masking (torch RNG) is not reproduced.
    z = x_ref[...].astype(jnp.float32) + y_ref[...].astype(jnp.float32)  # [R, F]

    # One-pass statistics: sum and sum-of-squares (independent reductions).
    s1 = jnp.sum(z, axis=-1, keepdims=True)            # [R, 1]
    s2 = jnp.sum(z * z, axis=-1, keepdims=True)        # [R, 1]
    mean = s1 * (1.0 / feat)
    # torch.std default: unbiased (divide by N-1), matching the reference code.
    var = (s2 - s1 * mean) * (1.0 / (feat - 1))
    var = jnp.maximum(var, 0.0)                        # guard tiny cancellation
    std = jnp.sqrt(var)
    inv = pl.reciprocal(std + eps, approx=False)       # EUP slot, frees VALU

    a = a_ref[...].astype(jnp.float32)                 # [1, F], VMEM-resident
    b = b_ref[...].astype(jnp.float32)
    o_ref[...] = (a * ((z - mean) * inv) + b).astype(o_ref.dtype)


def _pick_tile_rows(rows, feat, itemsize):
    """Largest row tile whose double-buffered working set (x, y, out) fits the
    smallest scoped-VMEM default (16 MiB on v5e); capped at 1024 rows."""
    budget = 12 * 1024 * 1024
    bytes_per_row = feat * itemsize * 3 * 2            # 3 slabs x 2 buffers
    tile = budget // max(bytes_per_row, 1)
    tile = max(8, min(1024, int(tile)))
    tile -= tile % 8
    if tile >= rows:
        return rows
    return tile


def sublayer_connection(x, sublayer_out, a_2, b_2, eps=1e-6, tile_rows=None):
    """x, sublayer_out: [B, S, F]; a_2, b_2: [F].  Output dtype == x.dtype."""
    B, S, F = x.shape
    rows = B * S
    x2 = x.reshape(rows, F)                            # keep caller dtype (bf16 ok)
    y2 = sublayer_out.reshape(rows, F).astype(x.dtype)
    a2 = a_2.reshape(1, F).astype(jnp.float32)
    b2 = b_2.reshape(1, F).astype(jnp.float32)

    if tile_rows is None:
        tile_rows = _pick_tile_rows(rows, F, x2.dtype.itemsize)
    tile_rows = min(tile_rows, rows)
    if tile_rows != rows:
        tile_rows = max(8, tile_rows - tile_rows % 8)  # sublane alignment

    kernel = functools.partial(_sublayer_connection_kernel, eps=eps, feat=F)

    out = pl.pallas_call(
        kernel,
        out_shape=jax.ShapeDtypeStruct((rows, F), x.dtype),
        grid_spec=pltpu.PrefetchScalarGridSpec(
            num_scalar_prefetch=0,
            grid=(pl.cdiv(rows, tile_rows),),
            in_specs=[
                pl.BlockSpec((tile_rows, F), lambda i: (i, 0)),   # x
                pl.BlockSpec((tile_rows, F), lambda i: (i, 0)),   # sublayer(x)
                pl.BlockSpec((1, F), lambda i: (0, 0)),           # a_2 (gain)
                pl.BlockSpec((1, F), lambda i: (0, 0)),           # b_2 (bias)
            ],
            out_specs=pl.BlockSpec((tile_rows, F), lambda i: (i, 0)),
        ),
        compiler_params=pltpu.CompilerParams(
            # independent row tiles -> shard across TensorCores (v7x megacore)
            dimension_semantics=("parallel",),
        ),
    )(x2, y2, a2, b2)

    return out.reshape(B, S, F)


# ---------------------------------------------------------------------------
# Sublayers (injected nn.Modules in the PyTorch spec) — plain JAX here.
# TODO(synk): self_attn / feed_forward run as plain JAX (XLA) matmuls; only the
#             SublayerConnection (residual + dropout + LayerNorm) is a Pallas
#             kernel (a future step is fusing it into the GEMM epilogues).
# ---------------------------------------------------------------------------
def self_attention(x, mask, wq, wk, wv, wo):
    d = x.shape[-1]
    q, k, v = x @ wq, x @ wk, x @ wv
    scores = jnp.einsum("bqd,bkd->bqk", q, k) / jnp.sqrt(jnp.float32(d))
    scores = jnp.where(mask, scores, -1e9)
    p = jax.nn.softmax(scores, axis=-1)
    return jnp.einsum("bqk,bkd->bqd", p, v) @ wo


def feed_forward(x, w1, b1, w2, b2):
    return jax.nn.relu(x @ w1 + b1) @ w2 + b2


def encoder_layer_forward(x, mask, attn_params, ffn_params, ln0, ln1,
                          eps=1e-6, tile_rows=None):
    attn_out = self_attention(x, mask, *attn_params)
    x = sublayer_connection(x, attn_out, ln0[0], ln0[1], eps, tile_rows)
    ff_out = feed_forward(x, *ffn_params)
    return sublayer_connection(x, ff_out, ln1[0], ln1[1], eps, tile_rows)


# ---------------------------------------------------------------------------
# Plain-JAX reference (same unbiased-std semantics as the torch module)
# ---------------------------------------------------------------------------
def _layer_norm_ref(z, a, b, eps):
    feat = z.shape[-1]
    mean = jnp.mean(z, axis=-1, keepdims=True)
    std = jnp.sqrt(jnp.sum((z - mean) ** 2, axis=-1, keepdims=True) / (feat - 1))
    return a * (z - mean) / (std + eps) + b


def encoder_layer_ref(x, mask, attn_params, ffn_params, ln0, ln1, eps=1e-6):
    attn_out = self_attention(x, mask, *attn_params)
    x = _layer_norm_ref(x + attn_out, ln0[0], ln0[1], eps)
    ff_out = feed_forward(x, *ffn_params)
    return _layer_norm_ref(x + ff_out, ln1[0], ln1[1], eps)


if __name__ == "__main__":
    B, S, F_DIM, D_FF = 2, 64, 128, 256
    EPS = 1e-6
    key = jax.random.PRNGKey(0)
    ks = jax.random.split(key, 11)

    x = jax.random.normal(ks[0], (B, S, F_DIM), dtype=jnp.float32)
    mask = jnp.ones((B, 1, S), dtype=bool)  # all positions visible

    scale = 0.05
    wq = jax.random.normal(ks[1], (F_DIM, F_DIM), jnp.float32) * scale
    wk = jax.random.normal(ks[2], (F_DIM, F_DIM), jnp.float32) * scale
    wv = jax.random.normal(ks[3], (F_DIM, F_DIM), jnp.float32) * scale
    wo = jax.random.normal(ks[4], (F_DIM, F_DIM), jnp.float32) * scale
    w1 = jax.random.normal(ks[5], (F_DIM, D_FF), jnp.float32) * scale
    b1 = jax.random.normal(ks[6], (D_FF,), jnp.float32) * 0.01
    w2 = jax.random.normal(ks[7], (D_FF, F_DIM), jnp.float32) * scale
    b2 = jax.random.normal(ks[8], (F_DIM,), jnp.float32) * 0.01

    # LayerNorm params (first sublayer gets non-trivial gain/bias to test affine)
    a0 = 1.0 + 0.1 * jax.random.normal(ks[9], (F_DIM,), jnp.float32)
    b0 = 0.1 * jax.random.normal(ks[10], (F_DIM,), jnp.float32)
    a1 = jnp.ones((F_DIM,), jnp.float32)
    b1n = jnp.zeros((F_DIM,), jnp.float32)

    attn_params = (wq, wk, wv, wo)
    ffn_params = (w1, b1, w2, b2)

    # tile_rows=64 -> grid of 2 steps at this small demo size, exercising the
    # pipelined multi-tile path (production sizes auto-pick 512-1024 rows).
    out = encoder_layer_forward(x, mask, attn_params, ffn_params,
                                (a0, b0), (a1, b1n), eps=EPS, tile_rows=64)
    out = jax.block_until_ready(out)

    ref = encoder_layer_ref(x, mask, attn_params, ffn_params,
                            (a0, b0), (a1, b1n), eps=EPS)
    assert out.shape == (B, S, F_DIM)
    assert jnp.max(jnp.abs(out - ref)) < 2e-3, float(jnp.max(jnp.abs(out - ref)))

    # bf16 I/O path of the kernel (halves HBM traffic on this mem-bound op):
    # f32 math in registers, bf16 in/out.
    attn_out = self_attention(x, mask, *attn_params)
    xb = x.astype(jnp.bfloat16)
    yb = attn_out.astype(jnp.bfloat16)
    outb = sublayer_connection(xb, yb, a0, b0, eps=EPS, tile_rows=64)
    outb = jax.block_until_ready(outb)
    zb = xb.astype(jnp.float32) + yb.astype(jnp.float32)
    refb = _layer_norm_ref(zb, a0, b0, EPS)
    assert outb.dtype == jnp.bfloat16
    assert jnp.max(jnp.abs(outb.astype(jnp.float32) - refb)) < 0.06

    print("KERNEL_OK")
</pallas_src>

<mosaic_0001>
module attributes {stable_mosaic.version = 11 : i64} {
  func.func @_sublayer_connection_kernel(%arg0: i32, %arg1: memref<64x128xf32, #tpu.memory_space<vmem>>, %arg2: memref<64x128xf32, #tpu.memory_space<vmem>>, %arg3: memref<1x128xf32, #tpu.memory_space<vmem>>, %arg4: memref<1x128xf32, #tpu.memory_space<vmem>>, %arg5: memref<64x128xf32, #tpu.memory_space<vmem>>) attributes {dimension_semantics = [#tpu.dimension_semantics<parallel>], iteration_bounds = array<i64: 2>, scalar_prefetch = 0 : i64, scratch_operands = 0 : i64, tpu.core_type = #tpu.core_type<tc>, window_params = [{transform_indices = @transform_0, window_bounds = array<i64: 64, 128>}, {transform_indices = @transform_1, window_bounds = array<i64: 64, 128>}, {pipeline_mode = #tpu.pipeline_mode<synchronous>, transform_indices = @transform_2, window_bounds = array<i64: 1, 128>}, {pipeline_mode = #tpu.pipeline_mode<synchronous>, transform_indices = @transform_3, window_bounds = array<i64: 1, 128>}, {transform_indices = @transform_4, window_bounds = array<i64: 64, 128>}]} {
    %c0 = arith.constant 0 : index
    %c0_0 = arith.constant 0 : index
    %0 = vector.load %arg1[%c0, %c0_0] : memref<64x128xf32, #tpu.memory_space<vmem>>, vector<64x128xf32>
    %c0_1 = arith.constant 0 : index
    %c0_2 = arith.constant 0 : index
    %1 = vector.load %arg2[%c0_1, %c0_2] : memref<64x128xf32, #tpu.memory_space<vmem>>, vector<64x128xf32>
    %2 = arith.addf %0, %1 : vector<64x128xf32>
    %cst = arith.constant dense<0.000000e+00> : vector<64xf32>
    %3 = vector.multi_reduction <add>, %2, %cst [1] : vector<64x128xf32> to vector<64xf32>
    %4 = vector.shape_cast %3 : vector<64xf32> to vector<64x1xf32>
    %5 = arith.mulf %2, %2 : vector<64x128xf32>
    %cst_3 = arith.constant dense<0.000000e+00> : vector<64xf32>
    %6 = vector.multi_reduction <add>, %5, %cst_3 [1] : vector<64x128xf32> to vector<64xf32>
    %7 = vector.shape_cast %6 : vector<64xf32> to vector<64x1xf32>
    %cst_4 = arith.constant 7.812500e-03 : f32
    %8 = vector.broadcast %cst_4 : f32 to vector<64x1xf32>
    %9 = arith.mulf %4, %8 : vector<64x1xf32>
    %10 = arith.mulf %4, %9 : vector<64x1xf32>
    %11 = arith.subf %7, %10 : vector<64x1xf32>
    %cst_5 = arith.constant 0.00787401571 : f32
    %12 = vector.broadcast %cst_5 : f32 to vector<64x1xf32>
    %13 = arith.mulf %11, %12 : vector<64x1xf32>
    %cst_6 = arith.constant 0.000000e+00 : f32
    %14 = vector.broadcast %cst_6 : f32 to vector<64x1xf32>
    %15 = arith.maximumf %13, %14 : vector<64x1xf32>
    %16 = math.sqrt %15 : vector<64x1xf32>
    %cst_7 = arith.constant 9.99999997E-7 : f32
    %17 = vector.broadcast %cst_7 : f32 to vector<64x1xf32>
    %18 = arith.addf %16, %17 : vector<64x1xf32>
    %19 = tpu.reciprocal %18 : vector<64x1xf32> -> vector<64x1xf32>
    %c0_8 = arith.constant 0 : index
    %c0_9 = arith.constant 0 : index
    %20 = vector.load %arg3[%c0_8, %c0_9] : memref<1x128xf32, #tpu.memory_space<vmem>>, vector<1x128xf32>
    %c0_10 = arith.constant 0 : index
    %c0_11 = arith.constant 0 : index
    %21 = vector.load %arg4[%c0_10, %c0_11] : memref<1x128xf32, #tpu.memory_space<vmem>>, vector<1x128xf32>
    %22 = vector.broadcast %9 : vector<64x1xf32> to vector<64x128xf32>
    %23 = arith.subf %2, %22 : vector<64x128xf32>
    %24 = vector.broadcast %19 : vector<64x1xf32> to vector<64x128xf32>
    %25 = arith.mulf %23, %24 : vector<64x128xf32>
    %26 = vector.broadcast %20 : vector<1x128xf32> to vector<64x128xf32>
    %27 = arith.mulf %26, %25 : vector<64x128xf32>
    %28 = vector.broadcast %21 : vector<1x128xf32> to vector<64x128xf32>
    %29 = arith.addf %27, %28 : vector<64x128xf32>
    %c0_12 = arith.constant 0 : index
    %c0_13 = arith.constant 0 : index
    %30 = vector.load %arg5[%c0_12, %c0_13] : memref<64x128xf32, #tpu.memory_space<vmem>>, vector<64x128xf32>
    tpu.vector_store %arg5[%c0_12, %c0_13], %29 {strides = array<i32>} : memref<64x128xf32, #tpu.memory_space<vmem>>, vector<64x128xf32>,
    return
  }
  func.func @transform_0(%arg0: i32) -> (i32, i32) {
    %c0_i32 = arith.constant 0 : i32
    %c0_i32_0 = arith.constant 0 : i32
    return %arg0, %c0_i32 : i32, i32
  }
  func.func @transform_1(%arg0: i32) -> (i32, i32) {
    %c0_i32 = arith.constant 0 : i32
    %c0_i32_0 = arith.constant 0 : i32
    return %arg0, %c0_i32 : i32, i32
  }
  func.func @transform_2(%arg0: i32) -> (i32, i32) {
    %c0_i32 = arith.constant 0 : i32
    %c0_i32_0 = arith.constant 0 : i32
    %c0_i32_1 = arith.constant 0 : i32
    return %c0_i32, %c0_i32_0 : i32, i32
  }
  func.func @transform_3(%arg0: i32) -> (i32, i32) {
    %c0_i32 = arith.constant 0 : i32
    %c0_i32_0 = arith.constant 0 : i32
    %c0_i32_1 = arith.constant 0 : i32
    return %c0_i32, %c0_i32_0 : i32, i32
  }
  func.func @transform_4(%arg0: i32) -> (i32, i32) {
    %c0_i32 = arith.constant 0 : i32
    %c0_i32_0 = arith.constant 0 : i32
    return %arg0, %c0_i32 : i32, i32
  }
}

</mosaic_0001>

<llo_original>
// kernel: tpu_custom_call.1
$region0: #{tpu_custom_call.1}
  #allocation0 [shape = 'u32[]', space=smem, size = 0x4, offset = 0x4, fixed_abs, tag = 'smem constant byte address 0x4 - core index']
  #allocation1 [shape = 'u32[144,128]{1,0:T(1,128)}', space=vmem, size = 0x12000, scoped, tag = 'internal scratch']
  %s0 = inlined_call_operand.hbm [shape: f32[128,128], index: 0, kind: input, shape index: {}]
  %s1 = inlined_call_operand.hbm [shape: f32[128,128], index: 1, kind: input, shape index: {}]
  %s2 = inlined_call_operand.vmem [shape: f32[1,128], index: 2, kind: input, shape index: {}]
  %s3 = inlined_call_operand.vmem [shape: f32[1,128], index: 3, kind: input, shape index: {}]
  %s4 = inlined_call_operand.hbm [shape: f32[128,128], index: 4, kind: output, shape index: {}]
  %s5 = sld [smem:[#allocation0]]
  $region57: #{tpu_custom_call.1} parent=0
    _
  %s7 = ssub.s32 1, %s5
  %s8 = scalar_select 0, %s7, %s5
  $region1: #{tpu_custom_call.1} parent=0
    #allocation2 [shape = 'u8[65536]{0}', space=vmem, size = 0x10000, scoped, tag = 'input window, operand 0']
    #allocation3 [shape = 's32[2]{0}', space=sflag, size = 0x8, scoped, tag = 'scoped memory for tpu_custom_call.1']
    #allocation4 [shape = 's32[2]{0}', space=sflag, size = 0x8, scoped, tag = 'scoped memory for tpu_custom_call.1']
    #allocation5 [shape = 'u8[65536]{0}', space=vmem, size = 0x10000, scoped, tag = 'input window, operand 1']
    #allocation6 [shape = 's32[2]{0}', space=sflag, size = 0x8, scoped, tag = 'scoped memory for tpu_custom_call.1']
    #allocation7 [shape = 'u8[65536]{0}', space=vmem, size = 0x10000, scoped, tag = 'output window, operand 0']
    %9 = vsyncpa [#allocation3], 0
    %s10 = scalar_lea.sflag [#allocation3], 1
    %11 = vsyncpa %s10, 0
    %12 = vsyncpa [#allocation6], 0
    %s13 = scalar_lea.sflag [#allocation6], 1
    %14 = vsyncpa %s13, 0
    %15 = vsyncpa [#allocation4], 0
    %s16 = scalar_lea.sflag [#allocation4], 1
    %17 = vsyncpa %s16, 0
    loop: start=0, step=1, limit=4
    $region2: #{tpu_custom_call.1} parent=1 // loop_pre_header
      _
    $region3: #{tpu_custom_call.1} parent=1 // loop_header
      %s19 = sphi 0, %s23
      %p20 = scmp.ge.s32.totalorder %s19, 4
      %s29 = sphi 0, %s31
      %s32 = sphi 0, %s29
      %s33 = sphi 0, %s32
      %s49 = sphi 0, %s33
      %s55 = sphi 0, %s57
      %s58 = sphi 0, %s55
      %s59 = sphi 0, %s58
      %s75 = sphi 0, %s59
      %s79 = sphi 0, %s79
      %s81 = sphi 0, %s79
      %s82 = sphi 0, %s81
      %s96 = sphi 0, %s82
      %s100 = sphi 0, %s100
      %s102 = sphi 0, %s100
      %s103 = sphi 0, %s102
      %s117 = sphi 0, %s103
      %s123 = sphi 0, %s125
      %s126 = sphi 0, %s123
      %s127 = sphi 0, %s126
      %s143 = sphi 0, %s127
    $region4: #{tpu_custom_call.1} parent=1 // loop_header_branch
      %22 = sbr.rel (%p20) target = $region8
    $region5: #{tpu_custom_call.1} parent=1 // loop_body
      %s24 = ssub.s32 %s19, 1
      %s25 = ssub.s32 %s19, 2
      %s26 = sadd.s32 %s19, 1
      %s27 = ssub.s32 %s19, %s26
      %p28 = scmp.eq.s32.totalorder %s27, 0
      %s30 = sadd.s32 %s29, 1
      %s31 = scalar_select %p28, %s29, %s30
      %p34 = pneg %p28
      %p35 = scmp.eq.s32.totalorder %s19, 1
      %p36 = por %p34, %p35
      %p37 = scmp.ne.s32.totalorder %s29, %s32
      %p38 = scmp.eq.s32.totalorder %s19, 0
      %p39 = por %p37, %p38
      %p40 = scmp.ne.s32.totalorder %s29, %s32
      %p41 = scmp.eq.s32.totalorder %s24, 1
      %p42 = por %p40, %p41
      %p43 = scmp.ne.s32.totalorder %s32, %s33
      %p44 = scmp.eq.s32.totalorder %s24, 0
      %p45 = por %p43, %p44
      %p46 = scmp.ne.s32.totalorder %s32, %s33
      %p47 = scmp.eq.s32.totalorder %s25, 1
      %p48 = por %p46, %p47
      %p50 = scmp.ne.s32.totalorder %s33, %s49
      %p51 = scmp.eq.s32.totalorder %s25, 0
      %p52 = por %p50, %p51
      %s53 = ssub.s32 %s19, %s26
      %p54 = scmp.eq.s32.totalorder %s53, 0
      %s56 = sadd.s32 %s55, 1
      %s57 = scalar_select %p54, %s55, %s56
      %p60 = pneg %p54
      %p61 = scmp.eq.s32.totalorder %s19, 1
      %p62 = por %p60, %p61
      %p63 = scmp.ne.s32.totalorder %s55, %s58
      %p64 = scmp.eq.s32.totalorder %s19, 0
      %p65 = por %p63, %p64
      %p66 = scmp.ne.s32.totalorder %s55, %s58
      %p67 = scmp.eq.s32.totalorder %s24, 1
      %p68 = por %p66, %p67
      %p69 = scmp.ne.s32.totalorder %s58, %s59
      %p70 = scmp.eq.s32.totalorder %s24, 0
      %p71 = por %p69, %p70
      %p72 = scmp.ne.s32.totalorder %s58, %s59
      %p73 = scmp.eq.s32.totalorder %s25, 1
      %p74 = por %p72, %p73
      %p76 = scmp.ne.s32.totalorder %s59, %s75
      %p77 = scmp.eq.s32.totalorder %s25, 0
      %p78 = por %p76, %p77
      %s80 = sadd.s32 %s79, 1
      %p83 = scmp.eq.s32.totalorder %s19, 1
      %p84 = scmp.ne.s32.totalorder %s79, %s81
      %p85 = scmp.eq.s32.totalorder %s19, 0
      %p86 = por %p84, %p85
      %p87 = scmp.ne.s32.totalorder %s79, %s81
      %p88 = scmp.eq.s32.totalorder %s24, 1
      %p89 = por %p87, %p88
      %p90 = scmp.ne.s32.totalorder %s81, %s82
      %p91 = scmp.eq.s32.totalorder %s24, 0
      %p92 = por %p90, %p91
      %p93 = scmp.ne.s32.totalorder %s81, %s82
      %p94 = scmp.eq.s32.totalorder %s25, 1
      %p95 = por %p93, %p94
      %p97 = scmp.ne.s32.totalorder %s82, %s96
      %p98 = scmp.eq.s32.totalorder %s25, 0
      %p99 = por %p97, %p98
      %s101 = sadd.s32 %s100, 1
      %p104 = scmp.eq.s32.totalorder %s19, 1
      %p105 = scmp.ne.s32.totalorder %s100, %s102
      %p106 = scmp.eq.s32.totalorder %s19, 0
      %p107 = por %p105, %p106
      %p108 = scmp.ne.s32.totalorder %s100, %s102
      %p109 = scmp.eq.s32.totalorder %s24, 1
      %p110 = por %p108, %p109
      %p111 = scmp.ne.s32.totalorder %s102, %s103
      %p112 = scmp.eq.s32.totalorder %s24, 0
      %p113 = por %p111, %p112
      %p114 = scmp.ne.s32.totalorder %s102, %s103
      %p115 = scmp.eq.s32.totalorder %s25, 1
      %p116 = por %p114, %p115
      %p118 = scmp.ne.s32.totalorder %s103, %s117
      %p119 = scmp.eq.s32.totalorder %s25, 0
      %p120 = por %p118, %p119
      %s121 = ssub.s32 %s19, %s26
      %p122 = scmp.eq.s32.totalorder %s121, 0
      %s124 = sadd.s32 %s123, 1
      %s125 = scalar_select %p122, %s123, %s124
      %p128 = pneg %p122
      %p129 = scmp.eq.s32.totalorder %s19, 1
      %p130 = por %p128, %p129
      %p131 = scmp.ne.s32.totalorder %s123, %s126
      %p132 = scmp.eq.s32.totalorder %s19, 0
      %p133 = por %p131, %p132
      %p134 = scmp.ne.s32.totalorder %s123, %s126
      %p135 = scmp.eq.s32.totalorder %s24, 1
      %p136 = por %p134, %p135
      %p137 = scmp.ne.s32.totalorder %s126, %s127
      %p138 = scmp.eq.s32.totalorder %s24, 0
      %p139 = por %p137, %p138
      %p140 = scmp.ne.s32.totalorder %s126, %s127
      %p141 = scmp.eq.s32.totalorder %s25, 1
      %p142 = por %p140, %p141
      %p144 = scmp.ne.s32.totalorder %s127, %s143
      %p145 = scmp.eq.s32.totalorder %s25, 0
      %p146 = por %p144, %p145
      %p147 = scmp.le.s32.totalorder 1, %s19
      %p148 = scmp.lt.s32.totalorder %s19, 3
      %p149 = pnand %p147, %p148
      %p150 = pneg %p149
      // Predicated region
      $region9: #{tpu_custom_call.1} parent=5 // pred_check
        _
      $region10: #{tpu_custom_call.1} parent=5 // pred_check_branch
        %152 = sbr.rel (%p149) target = $region12
      $region11: #{tpu_custom_call.1} parent=5 // pred_region
        %s153 = ssub.s32 %s19, 1
        // Predicated region
        $region13: #{tpu_custom_call.1} parent=11 // pred_check
          %p154 = pneg %p92
        $region14: #{tpu_custom_call.1} parent=11 // pred_check_branch
          %156 = sbr.rel (%p154) target = $region16
        $region15: #{tpu_custom_call.1} parent=11 // pred_region
          _
        $region16: #{tpu_custom_call.1} parent=11 // pred_fallthru
          _
        // Predicated region
        $region17: #{tpu_custom_call.1} parent=11 // pred_check
          %p157 = pneg %p113
        $region18: #{tpu_custom_call.1} parent=11 // pred_check_branch
          %159 = sbr.rel (%p157) target = $region20
        $region19: #{tpu_custom_call.1} parent=11 // pred_region
          _
        $region20: #{tpu_custom_call.1} parent=11 // pred_fallthru
          _
      $region12: #{tpu_custom_call.1} parent=5 // pred_fallthru
        _
      %p160 = scmp.lt.s32.totalorder %s19, 2
      // Predicated region
      $region21: #{tpu_custom_call.1} parent=5 // pred_check
        %p161 = pneg %p160
      $region22: #{tpu_custom_call.1} parent=5 // pred_check_branch
        %163 = sbr.rel (%p161) target = $region24
      $region23: #{tpu_custom_call.1} parent=5 // pred_region
        // Predicated region
        $region25: #{tpu_custom_call.1} parent=23 // pred_check
          %p164 = pneg %p39
        $region26: #{tpu_custom_call.1} parent=23 // pred_check_branch
          %166 = sbr.rel (%p164) target = $region28
        $region27: #{tpu_custom_call.1} parent=23 // pred_region
          %s167 = sand.u32 %s29, 1
          %s168 = scalar_lea.sflag [#allocation3], %s167
          %s169 = sand.u32 %s29, 1
          %s170 = smul.addr %s169, 64
          %s171 = scalar_lea.vmem [#allocation2], %s170
          %s172 = smul.u32 8, %s19
          %s174 = ssub.s32 1024, 1024
          %175 = vsyncadd %s168, %s174
          %s176 = smul.addr %s172, 128
          %s177 = scalar_lea.hbm %s0, %s176
          %s178 = sshll.u32 %s171, 4
          %s179 = int_to_ptr.vmem [resolvable:$true] %s178
          %184 = dma.hbm_to_vmem [thread:$0]  %s177, 1024, %s179, %s168, 128, 128, 8
        $region28: #{tpu_custom_call.1} parent=23 // pred_fallthru
          _
        // Predicated region
        $region29: #{tpu_custom_call.1} parent=23 // pred_check
          %p185 = pneg %p65
        $region30: #{tpu_custom_call.1} parent=23 // pred_check_branch
          %187 = sbr.rel (%p185) target = $region32
        $region31: #{tpu_custom_call.1} parent=23 // pred_region
          %s188 = sand.u32 %s55, 1
          %s189 = scalar_lea.sflag [#allocation6], %s188
          %s190 = sand.u32 %s55, 1
          %s191 = smul.addr %s190, 64
          %s192 = scalar_lea.vmem [#allocation5], %s191
          %s193 = smul.u32 8, %s19
          %s195 = ssub.s32 1024, 1024
          %196 = vsyncadd %s189, %s195
          %s197 = smul.addr %s193, 128
          %s198 = scalar_lea.hbm %s1, %s197
          %s199 = sshll.u32 %s192, 4
          %s200 = int_to_ptr.vmem [resolvable:$true] %s199
          %205 = dma.hbm_to_vmem [thread:$0]  %s198, 1024, %s200, %s189, 128, 128, 8
        $region32: #{tpu_custom_call.1} parent=23 // pred_fallthru
          _
      $region24: #{tpu_custom_call.1} parent=5 // pred_fallthru
        _
      %p206 = scmp.le.s32.totalorder 1, %s19
      %p207 = scmp.lt.s32.totalorder %s19, 3
      %p208 = pnand %p206, %p207
      %p209 = pneg %p208
      // Predicated region
      $region33: #{tpu_custom_call.1} parent=5 // pred_check
        _
      $region34: #{tpu_custom_call.1} parent=5 // pred_check_branch
        %211 = sbr.rel (%p208) target = $region36
      $region35: #{tpu_custom_call.1} parent=5 // pred_region
        %s212 = ssub.s32 %s19, 1
        %s213 = sand.u32 %s32, 1
        %s214 = scalar_lea.sflag [#allocation3], %s213
        %s215 = sand.u32 %s32, 1
        %s216 = smul.addr %s215, 64
        %s217 = scalar_lea.vmem [#allocation2], %s216
        // Predicated region
        $region37: #{tpu_custom_call.1} parent=35 // pred_check
          %p218 = pneg %p45
        $region38: #{tpu_custom_call.1} parent=35 // pred_check_branch
          %220 = sbr.rel (%p218) target = $region40
        $region39: #{tpu_custom_call.1} parent=35 // pred_region
          %221 = dma.done %s214, 1024
        $region40: #{tpu_custom_call.1} parent=35 // pred_fallthru
          _
        %s222 = sand.u32 %s58, 1
        %s223 = scalar_lea.sflag [#allocation6], %s222
        %s224 = sand.u32 %s58, 1
        %s225 = smul.addr %s224, 64
        %s226 = scalar_lea.vmem [#allocation5], %s225
        // Predicated region
        $region41: #{tpu_custom_call.1} parent=35 // pred_check
          %p227 = pneg %p71
        $region42: #{tpu_custom_call.1} parent=35 // pred_check_branch
          %229 = sbr.rel (%p227) target = $region44
        $region43: #{tpu_custom_call.1} parent=35 // pred_region
          %230 = dma.done %s223, 1024
        $region44: #{tpu_custom_call.1} parent=35 // pred_fallthru
          _
        %s231 = sand.u32 %s32, 1
        %s232 = scalar_lea.sflag [#allocation3], %s231
        %s233 = sand.u32 %s32, 1
        %s234 = smul.addr %s233, 64
        %s235 = scalar_lea.vmem [#allocation2], %s234
        %p236 = pneg %p45
        %p237 = pneg %p42
        %s238 = sand.u32 %s58, 1
        %s239 = scalar_lea.sflag [#allocation6], %s238
        %s240 = sand.u32 %s58, 1
        %s241 = smul.addr %s240, 64
        %s242 = scalar_lea.vmem [#allocation5], %s241
        %p243 = pneg %p71
        %p244 = pneg %p68
        %p245 = pneg %p92
        %p246 = pneg %p89
        %p247 = pneg %p113
        %p248 = pneg %p110
        %p249 = pneg %p139
        %p250 = pneg %p136
        %s251 = sand.u32 %s126, 1
        %s252 = scalar_lea.sflag [#allocation4], %s251
        %s253 = sand.u32 %s126, 1
        %s254 = smul.addr %s253, 64
        %s255 = scalar_lea.vmem [#allocation7], %s254
        %s256 = smul.u32 8, %s24
        %s257 = smul.u32 8, %s24
        %s258 = smul.u32 8, %s24
        %v259 = vld [vmem:[%s217] sm:$0xff]
        %v260 = vld [vmem:[%s217 + $0x8] sm:$0xff]
        %v261 = vld [vmem:[%s217 + $0x10] sm:$0xff]
        %v262 = vld [vmem:[%s217 + $0x18] sm:$0xff]
        %v263 = vld [vmem:[%s217 + $0x20] sm:$0xff]
        %v264 = vld [vmem:[%s217 + $0x28] sm:$0xff]
        %v265 = vld [vmem:[%s217 + $0x30] sm:$0xff]
        %v266 = vld [vmem:[%s217 + $0x38] sm:$0xff]
        %v267 = vld [vmem:[%s226] sm:$0xff]
        %v268 = vld [vmem:[%s226 + $0x8] sm:$0xff]
        %v269 = vld [vmem:[%s226 + $0x10] sm:$0xff]
        %v270 = vld [vmem:[%s226 + $0x18] sm:$0xff]
        %v271 = vld [vmem:[%s226 + $0x20] sm:$0xff]
        %v272 = vld [vmem:[%s226 + $0x28] sm:$0xff]
        %v273 = vld [vmem:[%s226 + $0x30] sm:$0xff]
        %v274 = vld [vmem:[%s226 + $0x38] sm:$0xff]
        %v275 = vadd.f32 %v259, %v267
        %v276 = vadd.f32 %v260, %v268
        %v277 = vadd.f32 %v261, %v269
        %v278 = vadd.f32 %v262, %v270
        %v279 = vadd.f32 %v263, %v271
        %v280 = vadd.f32 %v264, %v272
        %v281 = vadd.f32 %v265, %v273
        %v282 = vadd.f32 %v266, %v274
        %283 = vadd.xlane.f32.xlu0 %v275
        %v284 = vpop.xlane.xlu0 %283
        %285 = vadd.xlane.f32.xlu0 %v276
        %v286 = vpop.xlane.xlu0 %285
        %287 = vadd.xlane.f32.xlu0 %v277
        %v288 = vpop.xlane.xlu0 %287
        %289 = vadd.xlane.f32.xlu0 %v278
        %v290 = vpop.xlane.xlu0 %289
        %291 = vadd.xlane.f32.xlu0 %v279
        %v292 = vpop.xlane.xlu0 %291
        %293 = vadd.xlane.f32.xlu0 %v280
        %v294 = vpop.xlane.xlu0 %293
        %295 = vadd.xlane.f32.xlu0 %v281
        %v296 = vpop.xlane.xlu0 %295
        %297 = vadd.xlane.f32.xlu0 %v282
        %v298 = vpop.xlane.xlu0 %297
        %v299 = vmul.f32 %v275, %v275
        %v300 = vmul.f32 %v276, %v276
        %v301 = vmul.f32 %v277, %v277
        %v302 = vmul.f32 %v278, %v278
        %v303 = vmul.f32 %v279, %v279
        %v304 = vmul.f32 %v280, %v280
        %v305 = vmul.f32 %v281, %v281
        %v306 = vmul.f32 %v282, %v282
        %307 = vadd.xlane.f32.xlu0 %v299
        %v308 = vpop.xlane.xlu0 %307
        %309 = vadd.xlane.f32.xlu0 %v300
        %v310 = vpop.xlane.xlu0 %309
        %311 = vadd.xlane.f32.xlu0 %v301
        %v312 = vpop.xlane.xlu0 %311
        %313 = vadd.xlane.f32.xlu0 %v302
        %v314 = vpop.xlane.xlu0 %313
        %315 = vadd.xlane.f32.xlu0 %v303
        %v316 = vpop.xlane.xlu0 %315
        %317 = vadd.xlane.f32.xlu0 %v304
        %v318 = vpop.xlane.xlu0 %317
        %319 = vadd.xlane.f32.xlu0 %v305
        %v320 = vpop.xlane.xlu0 %319
        %321 = vadd.xlane.f32.xlu0 %v306
        %v322 = vpop.xlane.xlu0 %321
        %v323 = vmul.f32 %v284, 0.0078125
        %v324 = vmul.f32 %v286, 0.0078125
        %v325 = vmul.f32 %v288, 0.0078125
        %v326 = vmul.f32 %v290, 0.0078125
        %v327 = vmul.f32 %v292, 0.0078125
        %v328 = vmul.f32 %v294, 0.0078125
        %v329 = vmul.f32 %v296, 0.0078125
        %v330 = vmul.f32 %v298, 0.0078125
        %v331 = vmul.f32 %v284, %v323
        %v332 = vmul.f32 %v286, %v324
        %v333 = vmul.f32 %v288, %v325
        %v334 = vmul.f32 %v290, %v326
        %v335 = vmul.f32 %v292, %v327
        %v336 = vmul.f32 %v294, %v328
        %v337 = vmul.f32 %v296, %v329
        %v338 = vmul.f32 %v298, %v330
        %v339 = vsub.f32 %v308, %v331
        %v340 = vsub.f32 %v310, %v332
        %v341 = vsub.f32 %v312, %v333
        %v342 = vsub.f32 %v314, %v334
        %v343 = vsub.f32 %v316, %v335
        %v344 = vsub.f32 %v318, %v336
        %v345 = vsub.f32 %v320, %v337
        %v346 = vsub.f32 %v322, %v338
        %v347 = vmul.f32 %v339, 0.007874016
        %v348 = vmul.f32 %v340, 0.007874016
        %v349 = vmul.f32 %v341, 0.007874016
        %v350 = vmul.f32 %v342, 0.007874016
        %v351 = vmul.f32 %v343, 0.007874016
        %v352 = vmul.f32 %v344, 0.007874016
        %v353 = vmul.f32 %v345, 0.007874016
        %v354 = vmul.f32 %v346, 0.007874016
        %v355 = vmax.f32 %v347, 0.0
        %v356 = vmax.f32 %v348, 0.0
        %v357 = vmax.f32 %v349, 0.0
        %v358 = vmax.f32 %v350, 0.0
        %v359 = vmax.f32 %v351, 0.0
        %v360 = vmax.f32 %v352, 0.0
        %v361 = vmax.f32 %v353, 0.0
        %v362 = vmax.f32 %v354, 0.0
        %v363 = vrsqrt.pop %v355
        %v364 = vmul.f32 %v355, %v363
        %vm365 = vcmp.eq.f32.partialorder %v355, inf
        %v366 = vsel %vm365, %v355, %v364
        %vm367 = vcmp.eq.f32.partialorder %v355, 0.0
        %v368 = vand.u32 %v355, 2147483648
        %v369 = vsel %vm367, %v368, %v366
        %v370 = vrsqrt.pop %v356
        %v371 = vmul.f32 %v356, %v370
        %vm372 = vcmp.eq.f32.partialorder %v356, inf
        %v373 = vsel %vm372, %v356, %v371
        %vm374 = vcmp.eq.f32.partialorder %v356, 0.0
        %v375 = vand.u32 %v356, 2147483648
        %v376 = vsel %vm374, %v375, %v373
        %v377 = vrsqrt.pop %v357
        %v378 = vmul.f32 %v357, %v377
        %vm379 = vcmp.eq.f32.partialorder %v357, inf
        %v380 = vsel %vm379, %v357, %v378
        %vm381 = vcmp.eq.f32.partialorder %v357, 0.0
        %v382 = vand.u32 %v357, 2147483648
        %v383 = vsel %vm381, %v382, %v380
        %v384 = vrsqrt.pop %v358
        %v385 = vmul.f32 %v358, %v384
        %vm386 = vcmp.eq.f32.partialorder %v358, inf
        %v387 = vsel %vm386, %v358, %v385
        %vm388 = vcmp.eq.f32.partialorder %v358, 0.0
        %v389 = vand.u32 %v358, 2147483648
        %v390 = vsel %vm388, %v389, %v387
        %v391 = vrsqrt.pop %v359
        %v392 = vmul.f32 %v359, %v391
        %vm393 = vcmp.eq.f32.partialorder %v359, inf
        %v394 = vsel %vm393, %v359, %v392
        %vm395 = vcmp.eq.f32.partialorder %v359, 0.0
        %v396 = vand.u32 %v359, 2147483648
        %v397 = vsel %vm395, %v396, %v394
        %v398 = vrsqrt.pop %v360
        %v399 = vmul.f32 %v360, %v398
        %vm400 = vcmp.eq.f32.partialorder %v360, inf
        %v401 = vsel %vm400, %v360, %v399
        %vm402 = vcmp.eq.f32.partialorder %v360, 0.0
        %v403 = vand.u32 %v360, 2147483648
        %v404 = vsel %vm402, %v403, %v401
        %v405 = vrsqrt.pop %v361
        %v406 = vmul.f32 %v361, %v405
        %vm407 = vcmp.eq.f32.partialorder %v361, inf
        %v408 = vsel %vm407, %v361, %v406
        %vm409 = vcmp.eq.f32.partialorder %v361, 0.0
        %v410 = vand.u32 %v361, 2147483648
        %v411 = vsel %vm409, %v410, %v408
        %v412 = vrsqrt.pop %v362
        %v413 = vmul.f32 %v362, %v412
        %vm414 = vcmp.eq.f32.partialorder %v362, inf
        %v415 = vsel %vm414, %v362, %v413
        %vm416 = vcmp.eq.f32.partialorder %v362, 0.0
        %v417 = vand.u32 %v362, 2147483648
        %v418 = vsel %vm416, %v417, %v415
        %v419 = vadd.f32 %v369, 1e-06
        %v420 = vadd.f32 %v376, 1e-06
        %v421 = vadd.f32 %v383, 1e-06
        %v422 = vadd.f32 %v390, 1e-06
        %v423 = vadd.f32 %v397, 1e-06
        %v424 = vadd.f32 %v404, 1e-06
        %v425 = vadd.f32 %v411, 1e-06
        %v426 = vadd.f32 %v418, 1e-06
        %v427 = vrcp.pop %v419
        %v428 = vrcp.pop %v420
        %v429 = vrcp.pop %v421
        %v430 = vrcp.pop %v422
        %v431 = vrcp.pop %v423
        %v432 = vrcp.pop %v424
        %v433 = vrcp.pop %v425
        %v434 = vrcp.pop %v426
        %v435 = vld [vmem:[%s2] sm:$0x1]
        %v436 = vld [vmem:[%s3] sm:$0x1]
        %v437 = vsub.f32 %v275, %v323
        %v438 = vsub.f32 %v276, %v324
        %v439 = vsub.f32 %v277, %v325
        %v440 = vsub.f32 %v278, %v326
        %v441 = vsub.f32 %v279, %v327
        %v442 = vsub.f32 %v280, %v328
        %v443 = vsub.f32 %v281, %v329
        %v444 = vsub.f32 %v282, %v330
        %v445 = vmul.f32 %v437, %v427
        %v446 = vmul.f32 %v438, %v428
        %v447 = vmul.f32 %v439, %v429
        %v448 = vmul.f32 %v440, %v430
        %v449 = vmul.f32 %v441, %v431
        %v450 = vmul.f32 %v442, %v432
        %v451 = vmul.f32 %v443, %v433
        %v452 = vmul.f32 %v444, %v434
        %v454 = vlaneseq
        %v455 = vshrl.u32 %v454, 7
        %v456 = vsub.s32 0, %v455
        %v457 = vrot.slane %v435, %v456
        %v459 = vmul.f32 %v457, %v445
        %v460 = vmul.f32 %v457, %v446
        %v461 = vmul.f32 %v457, %v447
        %v462 = vmul.f32 %v457, %v448
        %v463 = vmul.f32 %v457, %v449
        %v464 = vmul.f32 %v457, %v450
        %v465 = vmul.f32 %v457, %v451
        %v466 = vmul.f32 %v457, %v452
        %v468 = vlaneseq
        %v469 = vshrl.u32 %v468, 7
        %v470 = vsub.s32 0, %v469
        %v471 = vrot.slane %v436, %v470
        %v473 = vadd.f32 %v459, %v471
        %v474 = vadd.f32 %v460, %v471
        %v475 = vadd.f32 %v461, %v471
        %v476 = vadd.f32 %v462, %v471
        %v477 = vadd.f32 %v463, %v471
        %v478 = vadd.f32 %v464, %v471
        %v479 = vadd.f32 %v465, %v471
        %v480 = vadd.f32 %v466, %v471
        %481 = vst [vmem:[%s255] sm:$0xff] %v473
        %482 = vst [vmem:[%s255 + $0x8] sm:$0xff] %v474
        %483 = vst [vmem:[%s255 + $0x10] sm:$0xff] %v475
        %484 = vst [vmem:[%s255 + $0x18] sm:$0xff] %v476
        %485 = vst [vmem:[%s255 + $0x20] sm:$0xff] %v477
        %486 = vst [vmem:[%s255 + $0x28] sm:$0xff] %v478
        %487 = vst [vmem:[%s255 + $0x30] sm:$0xff] %v479
        %488 = vst [vmem:[%s255 + $0x38] sm:$0xff] %v480
        %s489 = sand.u32 %s126, 1
        %s490 = scalar_lea.sflag [#allocation4], %s489
        %s491 = sand.u32 %s126, 1
        %s492 = smul.addr %s491, 64
        %s493 = scalar_lea.vmem [#allocation7], %s492
        // Predicated region
        $region45: #{tpu_custom_call.1} parent=35 // pred_check
          %p494 = pneg %p136
        $region46: #{tpu_custom_call.1} parent=35 // pred_check_branch
          %496 = sbr.rel (%p494) target = $region48
        $region47: #{tpu_custom_call.1} parent=35 // pred_region
          %s497 = smul.u32 8, %s24
          %s499 = ssub.s32 1024, 1024
          %500 = vsyncadd %s490, %s499
          %s501 = smul.addr %s497, 128
          %s502 = scalar_lea.hbm %s4, %s501
          %s503 = sshll.u32 %s493, 4
          %s504 = int_to_ptr.vmem [resolvable:$true] %s503
          %509 = dma.vmem_to_hbm [thread:$0]  %s504, 1024, %s502, %s490, 128, 128, 8
        $region48: #{tpu_custom_call.1} parent=35 // pred_fallthru
          _
      $region36: #{tpu_custom_call.1} parent=5 // pred_fallthru
        _
      %p510 = scmp.le.s32.totalorder 2, %s19
      // Predicated region
      $region49: #{tpu_custom_call.1} parent=5 // pred_check
        %p511 = pneg %p510
      $region50: #{tpu_custom_call.1} parent=5 // pred_check_branch
        %513 = sbr.rel (%p511) target = $region52
      $region51: #{tpu_custom_call.1} parent=5 // pred_region
        %s514 = ssub.s32 %s19, 2
        // Predicated region
        $region53: #{tpu_custom_call.1} parent=51 // pred_check
          %p515 = pneg %p142
        $region54: #{tpu_custom_call.1} parent=51 // pred_check_branch
          %517 = sbr.rel (%p515) target = $region56
        $region55: #{tpu_custom_call.1} parent=51 // pred_region
          %s518 = sand.u32 %s127, 1
          %s519 = scalar_lea.sflag [#allocation4], %s518
          %s520 = sand.u32 %s127, 1
          %s521 = smul.addr %s520, 64
          %s522 = scalar_lea.vmem [#allocation7], %s521
          %523 = dma.done %s519, 1024
        $region56: #{tpu_custom_call.1} parent=51 // pred_fallthru
          _
      $region52: #{tpu_custom_call.1} parent=5 // pred_fallthru
        _
    $region6: #{tpu_custom_call.1} parent=1 // loop_footer
      %s23 = sadd.s32 1, %s19
    $region7: #{tpu_custom_call.1} parent=1 // loop_footer_branch
      %18 = sbr.rel target = $region3
    $region8: #{tpu_custom_call.1} parent=1 // loop_exit
      _
    %524 = vsyncpa [#allocation3], 1
    %s525 = scalar_lea.sflag [#allocation3], 1
    %526 = vsyncpa %s525, 1
    %527 = vsyncpa [#allocation6], 1
    %s528 = scalar_lea.sflag [#allocation6], 1
    %529 = vsyncpa %s528, 1
    %530 = vsyncpa [#allocation4], 1
    %s531 = scalar_lea.sflag [#allocation4], 1
    %532 = vsyncpa %s531, 1

</llo_original>
